<compile_context>
chip_gen: v7x
topology: tpu7x:2x2x1
jax: 0.10.0
libtpu: 0.0.40
codegen_flags: <defaults>
</compile_context>

<pallas_src>
import math

import jax
import jax.numpy as jnp
import numpy as np
from jax.experimental import pallas as pl
from jax.experimental.pallas import tpu as pltpu


def _round_up(x, m):
    return ((x + m - 1) // m) * m


# ----------------------------- Pallas kernel ------------------------------- #
def _fused_embedding_kernel(x_ref, w_ref, o_ref):
    # x_ref: (row_tile, pack*Kp)  fused operands, `pack` tokens per 128-lane row
    # w_ref: (pack*Kp, pack*D)    block-diagonal stacked encoder weights (resident)
    # o_ref: (row_tile, pack*D)   `pack` tokens' D-dim embeddings per row (lane dense)
    o_ref[...] = jnp.dot(x_ref[...], w_ref[...], preferred_element_type=jnp.float32)


def fused_embedding_matmul(x_packed, w_blockdiag, row_tile):
    n_rows, lanes_in = x_packed.shape
    lanes_out = w_blockdiag.shape[1]
    assert n_rows % row_tile == 0
    return pl.pallas_call(
        _fused_embedding_kernel,
        out_shape=jax.ShapeDtypeStruct((n_rows, lanes_out), jnp.float32),
        grid=(n_rows // row_tile,),
        in_specs=[
            pl.BlockSpec((row_tile, lanes_in), lambda i: (i, 0)),
            pl.BlockSpec((lanes_in, lanes_out), lambda i: (0, 0)),  # stays resident
        ],
        out_specs=pl.BlockSpec((row_tile, lanes_out), lambda i: (i, 0)),
        compiler_params=pltpu.CompilerParams(dimension_semantics=("parallel",)),
    )(x_packed, w_blockdiag)


# --------------------------- host packing glue ------------------------------ #
def build_fused_batch(node_data, edge_data, edge_index, etype_list, rand_node_id,
                      node_nums, edge_nums, pack, Kp, max_row_tile=512):
    """Ragged graph batch -> fused per-token operand rows, packed `pack` tokens per
    lane row.  Pure index bookkeeping (same role as torch get_batch /
    get_index_embed); padding rows are all-zero so the kernel output is already
    masked_fill'ed."""
    node_data = np.asarray(node_data, np.float32)
    edge_data = np.asarray(edge_data, np.float32)
    edge_index = np.asarray(edge_index)
    rand_node_id = np.asarray(rand_node_id, np.float32)

    B = len(node_nums)
    T = max(n + e for n, e in zip(node_nums, edge_nums)) + 2
    Dr = rand_node_id.shape[-1]
    K = 16 + 2 * Dr
    assert K <= Kp
    oh = 8 + 2 * Dr                                         # one-hot column base

    N = B * T
    n_packed = -(-N // pack)                                # packed rows with real tokens
    row_tile = min(max_row_tile, _round_up(n_packed, 8))    # sublane-aligned grid tile
    n_packed_pad = _round_up(n_packed, row_tile)
    n_tokens_pad = n_packed_pad * pack

    Xtok = np.zeros((B, T, Kp), np.float32)
    padded_index = np.zeros((B, T, 2), np.int32)
    pmask = np.ones((B, T), bool)

    no = eo = 0
    for b in range(B):
        n, e = int(node_nums[b]), int(edge_nums[b])
        nd, ed = node_data[no:no + n], edge_data[eo:eo + e]
        rid = rand_node_id[no:no + n]

        idx = np.zeros((n + e, 2), np.int64)
        idx[:n, 0] = idx[:n, 1] = np.arange(n)
        idx[n:] = edge_index[:, eo:eo + e].T                # (src, dst) pairs per edge
        padded_index[b, :n + e] = idx
        pmask[b, :n + e] = False

        Xtok[b, :n, 0:4] = nd                               # -> node_encoder weight
        Xtok[b, n:n + e, 4:8] = ed                          # -> edge_encoder weight
        Xtok[b, :n + e, 8:8 + 2 * Dr] = np.concatenate(     # -> rand_encoder weight
            [rid[idx[:, 0]], rid[idx[:, 1]]], axis=-1)
        eq = idx[:, 0] == idx[:, 1]
        Xtok[b, :n + e, oh + 0] = (~eq).astype(np.float32)  # -> order_encoder[1]
        Xtok[b, :n + e, oh + 1] = eq.astype(np.float32)     # -> order_encoder[2]
        et = np.asarray(etype_list[b]).astype(np.int64)
        Xtok[b, np.arange(n, n + e), oh + 2 + et] = 1.0     # -> etype_encoder rows
        Xtok[b, :n, oh + 6] = 1.0                           # -> node_encoder bias
        Xtok[b, n:n + e, oh + 7] = 1.0                      # -> edge_encoder bias
        no += n
        eo += e

    X = np.zeros((n_tokens_pad, Kp), np.float32)
    X[:N] = Xtok.reshape(N, Kp)
    x_packed = X.reshape(n_packed_pad, pack * Kp)           # 4 tokens per 128-lane row

    aux = dict(B=B, T=T, row_tile=row_tile, padded_index=padded_index, pmask=pmask)
    return x_packed, aux


def make_fused_weight(params, Dr, Kp, pack):
    """Stack every encoder weight / bias / embedding table into one [Kp, D] weight,
    then replicate it block-diagonally so `pack` tokens share one 128-lane matmul."""
    D = params["wn"].shape[1]
    oh = 8 + 2 * Dr
    w = jnp.zeros((Kp, D), jnp.float32)
    w = w.at[0:4].set(params["wn"])
    w = w.at[4:8].set(params["we"])
    w = w.at[8:8 + 2 * Dr].set(params["wr"])
    # order_encoder[0] (padding order) never reaches the output (masked_fill), so
    # only rows 1 and 2 are stacked.
    w = w.at[oh + 0].set(params["order_tab"][1])
    w = w.at[oh + 1].set(params["order_tab"][2])
    w = w.at[oh + 2:oh + 6].set(params["etype_tab"])
    w = w.at[oh + 6].set(params["bn"][0])
    w = w.at[oh + 7].set(params["be"][0])

    wbd = jnp.zeros((pack * Kp, pack * D), jnp.float32)
    for g in range(pack):
        wbd = wbd.at[g * Kp:(g + 1) * Kp, g * D:(g + 1) * D].set(w)
    return wbd


# ------------------------------ forward pass -------------------------------- #
def finetune_embedding_forward(batched_data, params, max_row_tile=512):
    D = params["wn"].shape[1]
    Dr = batched_data["rand_node_id"].shape[-1]
    pack = 128 // D if (D <= 128 and 128 % D == 0) else 1   # tokens per 128-lane row
    Kp = _round_up(16 + 2 * Dr, 8)

    x_packed, aux = build_fused_batch(
        batched_data["node_data"], batched_data["edge_data"],
        batched_data["edge_index"], batched_data["etype_embedding"],
        batched_data["rand_node_id"],
        list(batched_data["node_num"]), list(batched_data["edge_num"]),
        pack=pack, Kp=Kp, max_row_tile=max_row_tile)

    w_blockdiag = make_fused_weight(params, Dr=Dr, Kp=Kp, pack=pack)
    y = fused_embedding_matmul(jnp.asarray(x_packed), w_blockdiag, aux["row_tile"])

    B, T = aux["B"], aux["T"]
    feat = y.reshape(-1, D)[:B * T].reshape(B, T, D)        # lane unpack (layout only)

    # add_special_tokens: prepend CLS (graph_token).  The SEP write targets a
    # padding slot and the original masked_fill zeroes it, so it is a net no-op.
    cls = jnp.broadcast_to(params["graph_token"][None, :, :], (B, 1, D))
    padded_feature = jnp.concatenate([cls, feat], axis=1)
    padding_mask = jnp.concatenate(
        [jnp.zeros((B, 1), bool), jnp.asarray(aux["pmask"])], axis=1)
    return padded_feature, padding_mask, jnp.asarray(aux["padded_index"])


# ----------------------------- params / reference --------------------------- #
def init_parameters(key, D, Dr, n_layers):
    std = 0.2 / math.sqrt(n_layers)
    ks = jax.random.split(key, 8)
    return {
        # PyTorch Linear stores [out, in]; we keep the transposed [in, out] layout.
        "wn": jax.random.normal(ks[0], (4, D), jnp.float32) * std,
        "bn": jnp.zeros((1, D), jnp.float32),
        "we": jax.random.normal(ks[1], (4, D), jnp.float32) * std,
        "be": jnp.zeros((1, D), jnp.float32),
        "wr": jax.random.normal(ks[2], (2 * Dr, D), jnp.float32) * std,
        # nn.Embedding default init: N(0, 1)
        "order_tab": jax.random.normal(ks[3], (3, D), jnp.float32),
        "etype_tab": jax.random.normal(ks[4], (4, D), jnp.float32),
        "graph_token": jax.random.normal(ks[5], (1, D), jnp.float32),
        "sep_token": jax.random.normal(ks[6], (1, D), jnp.float32),  # zeroed by masked_fill
    }


def reference_forward(batched_data, params):
    """Plain numpy re-implementation of the torch forward (unfused). Test-only."""
    node_nums = list(batched_data["node_num"])
    edge_nums = list(batched_data["edge_num"])
    node_data = np.asarray(batched_data["node_data"], np.float32)
    edge_data = np.asarray(batched_data["edge_data"], np.float32)
    edge_index = np.asarray(batched_data["edge_index"])
    etype_list = batched_data["etype_embedding"]
    rand_node_id = np.asarray(batched_data["rand_node_id"], np.float32)

    wn, bn = np.asarray(params["wn"]), np.asarray(params["bn"])
    we, be = np.asarray(params["we"]), np.asarray(params["be"])
    wr = np.asarray(params["wr"])
    order_tab = np.asarray(params["order_tab"])
    etype_tab = np.asarray(params["etype_tab"])
    gt = np.asarray(params["graph_token"])

    B = len(node_nums)
    T = max(n + e for n, e in zip(node_nums, edge_nums)) + 2
    D = wn.shape[1]

    feat = np.zeros((B, T, D), np.float32)
    pidx = np.zeros((B, T, 2), np.int32)
    pmask = np.ones((B, T), bool)

    no = eo = 0
    for b in range(B):
        n, e = int(node_nums[b]), int(edge_nums[b])
        nd, ed = node_data[no:no + n], edge_data[eo:eo + e]
        rid = rand_node_id[no:no + n]
        idx = np.zeros((n + e, 2), np.int64)
        idx[:n, 0] = idx[:n, 1] = np.arange(n)
        idx[n:] = edge_index[:, eo:eo + e].T
        pidx[b, :n + e] = idx
        pmask[b, :n + e] = False

        feat[b, :n] = nd @ wn + bn
        feat[b, n:n + e] = ed @ we + be
        rie = np.concatenate([rid[idx[:, 0]], rid[idx[:, 1]]], axis=-1)
        feat[b, :n + e] += rie @ wr
        feat[b, :n + e] += order_tab[np.where(idx[:, 0] == idx[:, 1], 2, 1)]
        et = np.asarray(etype_list[b]).astype(np.int64)
        feat[b, n:n + e] += etype_tab[et]
        no += n
        eo += e

    feat[pmask] = 0.0   # masked_fill (also cancels the SEP write, a padding slot)
    padded_feature = np.concatenate([np.tile(gt[None], (B, 1, 1)), feat], axis=1)
    padding_mask = np.concatenate([np.zeros((B, 1), bool), pmask], axis=1)
    return padded_feature, padding_mask, pidx


# TODO(synk): orf_node_id path depends on gaussian_orthogonal_random_matrix_batched
# (undefined in the source module) and func_id/token_id use 1.8M / 319K row embedding
# tables + pdb guards; those flags are disabled in this synthetic config.

if __name__ == "__main__":
    key = jax.random.PRNGKey(0)
    B, D, Dr, n_layers = 2, 32, 8, 4
    node_nums = [3, 5]
    edge_nums = [4, 2]

    k1, k2, k3, k4, k5, kp = jax.random.split(key, 6)
    node_data = jax.random.normal(k1, (sum(node_nums), 4), jnp.float32)
    edge_data = jax.random.normal(k2, (sum(edge_nums), 4), jnp.float32)
    edge_index = jnp.concatenate(
        [jax.random.randint(jax.random.fold_in(k3, b), (2, e), 0, node_nums[b])
         for b, e in enumerate(edge_nums)], axis=1)                       # [2, sumE]
    etype_list = [jax.random.randint(jax.random.fold_in(k4, b), (e,), 0, 4)
                  for b, e in enumerate(edge_nums)]
    rand_node_id = jax.random.uniform(k5, (sum(node_nums), Dr), jnp.float32)
    rand_node_id = rand_node_id / jnp.linalg.norm(rand_node_id, axis=1, keepdims=True)

    params = init_parameters(kp, D, Dr, n_layers)

    batched_data = {
        "node_data": node_data, "node_num": node_nums,
        "edge_index": edge_index, "edge_data": edge_data, "edge_num": edge_nums,
        "etype_embedding": etype_list, "rand_node_id": rand_node_id,
    }

    # ---- run the Pallas forward (single grid step at this size) ----
    padded_feature, padding_mask, padded_index = finetune_embedding_forward(
        batched_data, params)
    jax.block_until_ready(padded_feature)

    # ---- correctness check (off the hot path) ----
    ref_feat, ref_mask, ref_index = reference_forward(batched_data, params)
    np.testing.assert_allclose(np.asarray(padded_feature), ref_feat,
                               rtol=1e-4, atol=1e-4)
    assert np.array_equal(np.asarray(padding_mask), ref_mask)
    assert np.array_equal(np.asarray(padded_index), ref_index)

    # ---- second check: larger batch exercising a multi-step grid ----
    R = 16
    big = {
        "node_data": jnp.concatenate([node_data] * R, axis=0),
        "node_num": node_nums * R,
        "edge_index": jnp.concatenate([edge_index] * R, axis=1),
        "edge_data": jnp.concatenate([edge_data] * R, axis=0),
        "edge_num": edge_nums * R,
        "etype_embedding": etype_list * R,
        "rand_node_id": jnp.concatenate([rand_node_id] * R, axis=0),
    }
    pf_big, pm_big, pi_big = finetune_embedding_forward(big, params, max_row_tile=16)
    jax.block_until_ready(pf_big)
    rf_big, rm_big, ri_big = reference_forward(big, params)
    np.testing.assert_allclose(np.asarray(pf_big), rf_big, rtol=1e-4, atol=1e-4)
    assert np.array_equal(np.asarray(pm_big), rm_big)
    assert np.array_equal(np.asarray(pi_big), ri_big)

    print("KERNEL_OK")
</pallas_src>

<mosaic_0001>
module attributes {stable_mosaic.version = 11 : i64} {
  func.func @_fused_embedding_kernel(%arg0: i32, %arg1: memref<8x128xf32, #tpu.memory_space<vmem>>, %arg2: memref<128x128xf32, #tpu.memory_space<vmem>>, %arg3: memref<8x128xf32, #tpu.memory_space<vmem>>) attributes {dimension_semantics = [#tpu.dimension_semantics<parallel>], iteration_bounds = array<i64: 1>, scalar_prefetch = 0 : i64, scratch_operands = 0 : i64, tpu.core_type = #tpu.core_type<tc>, window_params = [{transform_indices = @transform_0, window_bounds = array<i64: 8, 128>}, {pipeline_mode = #tpu.pipeline_mode<synchronous>, transform_indices = @transform_1, window_bounds = array<i64: 128, 128>}, {transform_indices = @transform_2, window_bounds = array<i64: 8, 128>}]} {
    %c0 = arith.constant 0 : index
    %c0_0 = arith.constant 0 : index
    %0 = vector.load %arg1[%c0, %c0_0] : memref<8x128xf32, #tpu.memory_space<vmem>>, vector<8x128xf32>
    %c0_1 = arith.constant 0 : index
    %c0_2 = arith.constant 0 : index
    %1 = vector.load %arg2[%c0_1, %c0_2] : memref<128x128xf32, #tpu.memory_space<vmem>>, vector<128x128xf32>
    %cst = arith.constant dense<0.000000e+00> : vector<8x128xf32>
    %2 = tpu.matmul %0, %1, %cst {dimension_numbers = #tpu.dot_dimension_numbers<[1], [0], [0], [1], [0, 0, 1, 1], [], []>} : vector<8x128xf32>, vector<128x128xf32>, vector<8x128xf32> -> vector<8x128xf32>
    %c0_3 = arith.constant 0 : index
    %c0_4 = arith.constant 0 : index
    %3 = vector.load %arg3[%c0_3, %c0_4] : memref<8x128xf32, #tpu.memory_space<vmem>>, vector<8x128xf32>
    tpu.vector_store %arg3[%c0_3, %c0_4], %2 {strides = array<i32>} : memref<8x128xf32, #tpu.memory_space<vmem>>, vector<8x128xf32>,
    return
  }
  func.func @transform_0(%arg0: i32) -> (i32, i32) {
    %c0_i32 = arith.constant 0 : i32
    %c0_i32_0 = arith.constant 0 : i32
    return %arg0, %c0_i32 : i32, i32
  }
  func.func @transform_1(%arg0: i32) -> (i32, i32) {
    %c0_i32 = arith.constant 0 : i32
    %c0_i32_0 = arith.constant 0 : i32
    %c0_i32_1 = arith.constant 0 : i32
    return %c0_i32, %c0_i32_0 : i32, i32
  }
  func.func @transform_2(%arg0: i32) -> (i32, i32) {
    %c0_i32 = arith.constant 0 : i32
    %c0_i32_0 = arith.constant 0 : i32
    return %arg0, %c0_i32 : i32, i32
  }
}

</mosaic_0001>

<llo_original>
// kernel: tpu_custom_call.1
$region0: #{tpu_custom_call.1}
  #allocation0 [shape = 'u32[]', space=smem, size = 0x4, offset = 0x4, fixed_abs, tag = 'smem constant byte address 0x4 - core index']
  #allocation1 [shape = 'u32[144,128]{1,0:T(1,128)}', space=vmem, size = 0x12000, scoped, tag = 'internal scratch']
  %s0 = inlined_call_operand.hbm [shape: f32[8,128], index: 0, kind: input, shape index: {}]
  %s1 = inlined_call_operand.hbm [shape: f32[128,128], index: 1, kind: input, shape index: {}]
  %s2 = inlined_call_operand.hbm [shape: f32[8,128], index: 2, kind: output, shape index: {}]
  %s3 = sld [smem:[#allocation0]]
  $region26: #{tpu_custom_call.1} parent=0
    _
  %s5 = ssub.s32 1, %s3
  %s6 = scalar_select 0, %s5, %s3
  $region1: #{tpu_custom_call.1} parent=0
    #allocation2 [shape = 'u8[4096]{0}', space=vmem, size = 0x1000, scoped, tag = 'input window, operand 0, single buffered']
    #allocation3 [shape = 's32[1]{0}', space=sflag, size = 0x4, scoped, tag = 'scoped memory for tpu_custom_call.1']
    #allocation4 [shape = 's32[1]{0}', space=sflag, size = 0x4, scoped, tag = 'scoped memory for tpu_custom_call.1']
    #allocation5 [shape = 'u8[65536]{0}', space=vmem, size = 0x10000, scoped, tag = 'input window, operand 1, single buffered']
    #allocation6 [shape = 's32[1]{0}', space=sflag, size = 0x4, scoped, tag = 'scoped memory for tpu_custom_call.1']
    #allocation7 [shape = 'u8[4096]{0}', space=vmem, size = 0x1000, scoped, tag = 'output window, operand 0, single buffered']
    %7 = vsyncpa [#allocation3], 0
    %8 = vsyncpa [#allocation6], 0
    %9 = vsyncpa [#allocation4], 0
    // Predicated region
    $region2: #{tpu_custom_call.1} parent=1 // pred_check
      _
    $region3: #{tpu_custom_call.1} parent=1 // pred_check_branch
      %11 = sbr.rel (0) target = $region5
    $region4: #{tpu_custom_call.1} parent=1 // pred_region
      %s13 = ssub.s32 128, 128
      %14 = vsyncadd [#allocation3], %s13
      %s16 = sshll.u32 [#allocation2], 4
      %s17 = int_to_ptr.vmem [resolvable:$true] %s16
      %19 = dma.hbm_to_vmem [thread:$0]  %s0, 128, %s17, [#allocation3]
    $region5: #{tpu_custom_call.1} parent=1 // pred_fallthru
      _
    // Predicated region
    $region6: #{tpu_custom_call.1} parent=1 // pred_check
      _
    $region7: #{tpu_custom_call.1} parent=1 // pred_check_branch
      %21 = sbr.rel (0) target = $region9
    $region8: #{tpu_custom_call.1} parent=1 // pred_region
      %s23 = ssub.s32 2048, 2048
      %24 = vsyncadd [#allocation6], %s23
      %s25 = sshll.u32 [#allocation5], 4
      %s26 = int_to_ptr.vmem [resolvable:$true] %s25
      %31 = dma.hbm_to_vmem [thread:$0]  %s1, 2048, %s26, [#allocation6], 128, 128, 8
    $region9: #{tpu_custom_call.1} parent=1 // pred_fallthru
      _
    // Predicated region
    $region10: #{tpu_custom_call.1} parent=1 // pred_check
      _
    $region11: #{tpu_custom_call.1} parent=1 // pred_check_branch
      %33 = sbr.rel (0) target = $region13
    $region12: #{tpu_custom_call.1} parent=1 // pred_region
      %34 = dma.done [#allocation3], 128
    $region13: #{tpu_custom_call.1} parent=1 // pred_fallthru
      _
    // Predicated region
    $region14: #{tpu_custom_call.1} parent=1 // pred_check
      _
    $region15: #{tpu_custom_call.1} parent=1 // pred_check_branch
      %36 = sbr.rel (0) target = $region17
    $region16: #{tpu_custom_call.1} parent=1 // pred_region
      %37 = dma.done [#allocation6], 2048
    $region17: #{tpu_custom_call.1} parent=1 // pred_fallthru
      _
    %v38 = vld [vmem:[#allocation2] sm:$0xff]
    %v39 = vld [vmem:[#allocation5] sm:$0xff]
    %v40 = vld [vmem:[#allocation5 + $0x8] sm:$0xff]
    %v41 = vld [vmem:[#allocation5 + $0x10] sm:$0xff]
    %v42 = vld [vmem:[#allocation5 + $0x18] sm:$0xff]
    %v43 = vld [vmem:[#allocation5 + $0x20] sm:$0xff]
    %v44 = vld [vmem:[#allocation5 + $0x28] sm:$0xff]
    %v45 = vld [vmem:[#allocation5 + $0x30] sm:$0xff]
    %v46 = vld [vmem:[#allocation5 + $0x38] sm:$0xff]
    %v47 = vld [vmem:[#allocation5 + $0x40] sm:$0xff]
    %v48 = vld [vmem:[#allocation5 + $0x48] sm:$0xff]
    %v49 = vld [vmem:[#allocation5 + $0x50] sm:$0xff]
    %v50 = vld [vmem:[#allocation5 + $0x58] sm:$0xff]
    %v51 = vld [vmem:[#allocation5 + $0x60] sm:$0xff]
    %v52 = vld [vmem:[#allocation5 + $0x68] sm:$0xff]
    %v53 = vld [vmem:[#allocation5 + $0x70] sm:$0xff]
    %v54 = vld [vmem:[#allocation5 + $0x78] sm:$0xff]
    %55 = vmatprep.subr.mxu0 0.0
    %56 = vmatpush1.msra.mxu0 %v39
    %57 = vmatprep.subr.mxu0 0.0
    %58 = vmatpush1.msra.mxu0 %v40
    %59 = vmatprep.subr.mxu0 0.0
    %60 = vmatpush1.msra.mxu0 %v41
    %61 = vmatprep.subr.mxu0 0.0
    %62 = vmatpush1.msra.mxu0 %v42
    %63 = vmatprep.subr.mxu0 0.0
    %64 = vmatpush1.msra.mxu0 %v43
    %65 = vmatprep.subr.mxu0 0.0
    %66 = vmatpush1.msra.mxu0 %v44
    %67 = vmatprep.subr.mxu0 0.0
    %68 = vmatpush1.msra.mxu0 %v45
    %69 = vmatprep.subr.mxu0 0.0
    %70 = vmatpush1.msra.mxu0 %v46
    %71 = vmatprep.subr.mxu0 0.0
    %72 = vmatpush1.msra.mxu0 %v47
    %73 = vmatprep.subr.mxu0 0.0
    %74 = vmatpush1.msra.mxu0 %v48
    %75 = vmatprep.subr.mxu0 0.0
    %76 = vmatpush1.msra.mxu0 %v49
    %77 = vmatprep.subr.mxu0 0.0
    %78 = vmatpush1.msra.mxu0 %v50
    %79 = vmatprep.subr.mxu0 0.0
    %80 = vmatpush1.msra.mxu0 %v51
    %81 = vmatprep.subr.mxu0 0.0
    %82 = vmatpush1.msra.mxu0 %v52
    %83 = vmatprep.subr.mxu0 0.0
    %84 = vmatpush1.msra.mxu0 %v53
    %85 = vmatprep.subr.mxu0 0.0
    %86 = vmatpush1.msra.mxu0 %v54
    %87 = vmatprep.subr.mxu0 0.0
    %88 = vmatpush1.msra.mxu0 0.0
    %89 = vmatprep.subr.mxu0 0.0
    %90 = vmatpush1.msra.mxu0 0.0
    %91 = vmatprep.subr.mxu0 0.0
    %92 = vmatpush1.msra.mxu0 0.0
    %93 = vmatprep.subr.mxu0 0.0
    %94 = vmatpush1.msra.mxu0 0.0
    %95 = vmatprep.subr.mxu0 0.0
    %96 = vmatpush1.msra.mxu0 0.0
    %97 = vmatprep.subr.mxu0 0.0
    %98 = vmatpush1.msra.mxu0 0.0
    %99 = vmatprep.subr.mxu0 0.0
    %100 = vmatpush1.msra.mxu0 0.0
    %101 = vmatprep.subr.mxu0 0.0
    %102 = vmatpush1.msra.mxu0 0.0
    %103 = vmatprep.subr.mxu0 0.0
    %104 = vmatpush1.msra.mxu0 0.0
    %105 = vmatprep.subr.mxu0 0.0
    %106 = vmatpush1.msra.mxu0 0.0
    %107 = vmatprep.subr.mxu0 0.0
    %108 = vmatpush1.msra.mxu0 0.0
    %109 = vmatprep.subr.mxu0 0.0
    %110 = vmatpush1.msra.mxu0 0.0
    %111 = vmatprep.subr.mxu0 0.0
    %112 = vmatpush1.msra.mxu0 0.0
    %113 = vmatprep.subr.mxu0 0.0
    %114 = vmatpush1.msra.mxu0 0.0
    %115 = vmatprep.subr.mxu0 0.0
    %116 = vmatpush1.msra.mxu0 0.0
    %117 = vmatprep.subr.mxu0 0.0
    %118 = vmatpush1.msra.mxu0 0.0
    %119 = vmatprep.mubr.f32.mxu0 0.0
    %120 = vmatmul.mubr.f32.gmra.mrb[0].mxu0 %v38
    %v121 = vpop.f32.mrb[0].mxu0
    %v122 = vadd.f32 0.0, %v121
    %v123 = vpop.f32.mrb[0].mxu0
    %124 = vdwg.mxu0
    %125 = vst [vmem:[#allocation7] sm:$0xff] %v122
    // Predicated region
    $region18: #{tpu_custom_call.1} parent=1 // pred_check
      _
    $region19: #{tpu_custom_call.1} parent=1 // pred_check_branch
      %127 = sbr.rel (0) target = $region21
    $region20: #{tpu_custom_call.1} parent=1 // pred_region
      %s129 = ssub.s32 128, 128
      %130 = vsyncadd [#allocation4], %s129
      %s132 = sshll.u32 [#allocation7], 4
      %s133 = int_to_ptr.vmem [resolvable:$true] %s132
      %135 = dma.vmem_to_hbm [thread:$0]  %s133, 128, %s2, [#allocation4]
    $region21: #{tpu_custom_call.1} parent=1 // pred_fallthru
      _
    // Predicated region
    $region22: #{tpu_custom_call.1} parent=1 // pred_check
      _
    $region23: #{tpu_custom_call.1} parent=1 // pred_check_branch
      %137 = sbr.rel (0) target = $region25
    $region24: #{tpu_custom_call.1} parent=1 // pred_region
      %138 = dma.done [#allocation4], 128
    $region25: #{tpu_custom_call.1} parent=1 // pred_fallthru
      _
    %139 = vsyncpa [#allocation3], 1
    %140 = vsyncpa [#allocation6], 1
    %141 = vsyncpa [#allocation4], 1

</llo_original>
